<compile_context>
chip_gen: v7x
topology: tpu7x:2x2x1
jax: 0.10.0
libtpu: 0.0.40
codegen_flags: <defaults>
</compile_context>

<pallas_src>
import jax
import jax.numpy as jnp
from jax.experimental import pallas as pl
from jax.experimental.pallas import tpu as pltpu


def _decoder_step_kernel(
    ids_ref,        # (TB, 1)    int32 token ids
    h0_ref,         # (TB, H)    initial hidden (layer 0)
    c0_ref,         # (TB, H)    initial cell
    enc_ref,        # (TB, S, H) encoder outputs
    emb_ref,        # (V, E)     embedding table
    wh_t_ref,       # (H, H)     attn weight, hidden half, pre-transposed
    we_t_ref,       # (H, H)     attn weight, encoder half, pre-transposed
    attn_b_ref,     # (1, H)
    v_ref,          # (1, H)     score vector (Linear(H,1,bias=False).weight)
    wih_ctx_t_ref,  # (H, 4H)    LSTM W_ih, context half, pre-transposed
    wih_emb_t_ref,  # (E, 4H)    LSTM W_ih, embedding half, pre-transposed
    whh_t_ref,      # (H, 4H)    LSTM W_hh, pre-transposed
    lstm_b_ref,     # (1, 4H)    b_ih + b_hh
    wfc_t_ref,      # (H, V)     fc weight, pre-transposed
    fc_b_ref,       # (1, V)
    logits_ref,     # (TB, V)    out
    h_out_ref,      # (TB, H)    out
    c_out_ref,      # (TB, H)    out
):
    f32 = jnp.float32
    h0 = h0_ref[...]
    c0 = c0_ref[...]
    enc = enc_ref[...]
    tb, s, hdim = enc.shape
    vocab = emb_ref.shape[0]

    def sigmoid(t):
        return 1.0 / (1.0 + jnp.exp(-t))

    # ---- embedding lookup as a one-hot matmul (MXU, no gather) -------------
    ids = ids_ref[...]                                               # (TB, 1) i32
    vocab_iota = jax.lax.broadcasted_iota(jnp.int32, (tb, vocab), 1)
    onehot = (vocab_iota == ids).astype(f32)                         # (TB, V)
    x_emb = jnp.dot(onehot, emb_ref[...], preferred_element_type=f32)  # (TB, E)

    # ---- attention (Bert variant: cat(h_rep, enc) @ W.T split as Wh/We) ----
    hh = jnp.dot(h0, wh_t_ref[...], preferred_element_type=f32)      # (TB, H)
    ee = jnp.dot(enc.reshape(tb * s, hdim), we_t_ref[...],
                 preferred_element_type=f32).reshape(tb, s, hdim)    # (TB, S, H)
    energy = jnp.maximum(
        ee + hh[:, None, :] + attn_b_ref[...][None, :, :], 0.0)      # (TB, S, H)

    # lane-major scores (TB, S): contract the H (lane) axis against v
    att = jnp.sum(energy * v_ref[...][None, :, :], axis=-1)          # (TB, S)

    # softmax over S (last / lane axis), EUP reciprocal + one Newton step
    m = jnp.max(att, axis=-1, keepdims=True)
    p = jnp.exp(att - m)
    denom = jnp.sum(p, axis=-1, keepdims=True)
    r = pl.reciprocal(denom, approx=True)
    r = r * (2.0 - denom * r)
    w = p * r                                                        # (TB, S)

    # context on the MXU: (TB,1,S) x (TB,S,H) -> (TB,1,H)
    ctx = jnp.einsum("bos,bsh->boh", w[:, None, :], enc,
                     preferred_element_type=f32)[:, 0, :]            # (TB, H)

    # ---- LSTM cell (1 layer, 1 step); PyTorch gate order i, f, g, o --------
    gates = (jnp.dot(ctx, wih_ctx_t_ref[...], preferred_element_type=f32)
             + jnp.dot(x_emb, wih_emb_t_ref[...], preferred_element_type=f32)
             + jnp.dot(h0, whh_t_ref[...], preferred_element_type=f32)
             + lstm_b_ref[...])                                      # (TB, 4H)
    i_g = sigmoid(gates[:, 0 * hdim:1 * hdim])
    f_g = sigmoid(gates[:, 1 * hdim:2 * hdim])
    g_g = jnp.tanh(gates[:, 2 * hdim:3 * hdim])
    o_g = sigmoid(gates[:, 3 * hdim:4 * hdim])
    c_new = f_g * c0 + i_g * g_g
    h_new = o_g * jnp.tanh(c_new)

    # ---- output projection --------------------------------------------------
    logits = jnp.dot(h_new, wfc_t_ref[...], preferred_element_type=f32) + fc_b_ref[...]

    logits_ref[...] = logits.astype(logits_ref.dtype)
    h_out_ref[...] = h_new.astype(h_out_ref.dtype)
    c_out_ref[...] = c_new.astype(c_out_ref.dtype)


def lstm_decoder_attention_bert(x_ids, h0_c0, encoder_outputs, params, *, block_b=None):
    """One decode step. Returns (out (B,1,V), (hidden (1,B,H), cell (1,B,H)))."""
    h0, c0 = h0_c0
    (B,) = x_ids.shape
    L, Bh, H = h0.shape
    assert L == 1 and Bh == B, "module only supports num_layers=1, unidirectional"
    _, S, He = encoder_outputs.shape
    assert He == H
    V, E = params["embedding"].shape

    TB = B if block_b is None else block_b
    assert B % TB == 0 and (TB == B or TB % 8 == 0)
    nb = B // TB

    # ---- host-side layout plumbing: split concat weights, pre-transpose ----
    attn_w = params["attn_w"]                         # (H, 2H) = [Wh | We]
    wh_t = jnp.transpose(attn_w[:, :H])               # (H, H)
    we_t = jnp.transpose(attn_w[:, H:])               # (H, H)
    attn_b = params["attn_b"].reshape(1, H)
    v_w = params["v_w"].reshape(1, H)

    w_ih = params["w_ih"]                             # (4H, H+E) = [ctx | emb]
    wih_ctx_t = jnp.transpose(w_ih[:, :H])            # (H, 4H)
    wih_emb_t = jnp.transpose(w_ih[:, H:])            # (E, 4H)
    whh_t = jnp.transpose(params["w_hh"])             # (H, 4H)
    lstm_b = (params["b_ih"] + params["b_hh"]).reshape(1, 4 * H)

    wfc_t = jnp.transpose(params["fc_w"])             # (H, V)
    fc_b = params["fc_b"].reshape(1, V)

    ids2 = x_ids.reshape(B, 1).astype(jnp.int32)
    h0_2d = h0[0]
    c0_2d = c0[0]

    # advisory cost estimate for XLA scheduling
    flops = 2 * B * (V * E + H * H + S * H * H + 2 * S * H
                     + 4 * H * (2 * H + E) + H * V)
    transcendentals = B * (S + 5 * H)
    bytes_accessed = 4 * int(
        ids2.size + h0_2d.size + c0_2d.size + encoder_outputs.size
        + params["embedding"].size + wh_t.size + we_t.size + attn_b.size + v_w.size
        + wih_ctx_t.size + wih_emb_t.size + whh_t.size + lstm_b.size
        + wfc_t.size + fc_b.size + B * V + 2 * B * H)

    def bb(*tail):   # batch-blocked operand
        return pl.BlockSpec((TB,) + tail, lambda b: (b,) + (0,) * len(tail))

    def full(shape):  # replicated full-array operand (weights)
        return pl.BlockSpec(shape, lambda b: (0,) * len(shape))

    in_specs = [
        bb(1),               # token ids
        bb(H),               # h0
        bb(H),               # c0
        bb(S, H),            # encoder outputs
        full((V, E)),        # embedding table
        full((H, H)),        # Wh^T
        full((H, H)),        # We^T
        full((1, H)),        # attn bias
        full((1, H)),        # v
        full((H, 4 * H)),    # W_ih ctx half ^T
        full((E, 4 * H)),    # W_ih emb half ^T
        full((H, 4 * H)),    # W_hh^T
        full((1, 4 * H)),    # lstm bias
        full((H, V)),        # fc^T
        full((1, V)),        # fc bias
    ]
    out_specs = [bb(V), bb(H), bb(H)]
    out_shape = (
        jax.ShapeDtypeStruct((B, V), jnp.float32),
        jax.ShapeDtypeStruct((B, H), jnp.float32),
        jax.ShapeDtypeStruct((B, H), jnp.float32),
    )

    logits, h_new, c_new = pl.pallas_call(
        _decoder_step_kernel,
        out_shape=out_shape,
        grid_spec=pltpu.PrefetchScalarGridSpec(
            num_scalar_prefetch=0,
            grid=(nb,),
            in_specs=in_specs,
            out_specs=out_specs,
        ),
        compiler_params=pltpu.CompilerParams(dimension_semantics=("parallel",)),
        cost_estimate=pl.CostEstimate(flops=flops,
                                      transcendentals=transcendentals,
                                      bytes_accessed=bytes_accessed),
    )(ids2, h0_2d, c0_2d, encoder_outputs, params["embedding"],
      wh_t, we_t, attn_b, v_w, wih_ctx_t, wih_emb_t, whh_t, lstm_b, wfc_t, fc_b)

    return logits[:, None, :], (h_new[None], c_new[None])


def _reference_forward(x_ids, h0_c0, enc, params):
    """Pure-JAX mirror of the PyTorch forward (num_layers=1)."""
    h0, c0 = h0_c0
    H = params["attn_w"].shape[0]
    B, S, _ = enc.shape
    emb = params["embedding"][x_ids]                                 # (B, E)
    x = emb[:, None, :]
    hid_rep = jnp.broadcast_to(h0[0][:, None, :], (B, S, H))
    cat = jnp.concatenate([hid_rep, enc], axis=2)                    # (B, S, 2H)
    energy = jax.nn.relu(cat @ params["attn_w"].T + params["attn_b"])
    attention = (energy @ params["v_w"].T)[..., 0]                   # (B, S)
    weights = jax.nn.softmax(attention, axis=1)[:, None, :]          # (B, 1, S)
    ctx = jnp.einsum("bos,bsh->boh", weights, enc)                   # (B, 1, H)
    lstm_in = jnp.concatenate([ctx, x], axis=2)[:, 0, :]             # (B, H+E)
    gates = (lstm_in @ params["w_ih"].T + h0[0] @ params["w_hh"].T
             + params["b_ih"] + params["b_hh"])
    i, f, g, o = jnp.split(gates, 4, axis=-1)
    i = jax.nn.sigmoid(i); f = jax.nn.sigmoid(f)
    g = jnp.tanh(g); o = jax.nn.sigmoid(o)
    c_new = f * c0[0] + i * g
    h_new = o * jnp.tanh(c_new)
    out = h_new @ params["fc_w"].T + params["fc_b"]                  # (B, V)
    return out[:, None, :], (h_new[None], c_new[None])


if __name__ == "__main__":
    B, S, H, E, V = 2, 8, 32, 32, 256

    key = jax.random.PRNGKey(0)
    ks = jax.random.split(key, 14)

    params = {
        "embedding": jax.random.normal(ks[0], (V, E), jnp.float32) * 0.1,
        "attn_w":    jax.random.normal(ks[1], (H, 2 * H), jnp.float32) * 0.1,
        "attn_b":    jax.random.normal(ks[2], (H,), jnp.float32) * 0.1,
        "v_w":       jax.random.normal(ks[3], (1, H), jnp.float32) * 0.1,
        "w_ih":      jax.random.normal(ks[4], (4 * H, H + E), jnp.float32) * 0.1,
        "w_hh":      jax.random.normal(ks[5], (4 * H, H), jnp.float32) * 0.1,
        "b_ih":      jax.random.normal(ks[6], (4 * H,), jnp.float32) * 0.1,
        "b_hh":      jax.random.normal(ks[7], (4 * H,), jnp.float32) * 0.1,
        "fc_w":      jax.random.normal(ks[8], (V, H), jnp.float32) * 0.1,
        "fc_b":      jax.random.normal(ks[9], (V,), jnp.float32) * 0.1,
    }
    params["embedding"] = params["embedding"].at[0].set(0.0)   # padding_idx = 0

    x_ids = jax.random.randint(ks[10], (B,), 1, V)
    h0 = jax.random.normal(ks[11], (1, B, H), jnp.float32) * 0.5
    c0 = jax.random.normal(ks[12], (1, B, H), jnp.float32) * 0.5
    enc = jax.random.normal(ks[13], (B, S, H), jnp.float32)

    out, (h_new, c_new) = lstm_decoder_attention_bert(x_ids, (h0, c0), enc, params)
    jax.block_until_ready((out, h_new, c_new))

    ref_out, (ref_h, ref_c) = _reference_forward(x_ids, (h0, c0), enc, params)

    assert out.shape == (B, 1, V), out.shape
    assert h_new.shape == (1, B, H) and c_new.shape == (1, B, H)
    for got, want in ((out, ref_out), (h_new, ref_h), (c_new, ref_c)):
        err = float(jnp.max(jnp.abs(got - want)))
        assert jnp.allclose(got, want, atol=1e-4, rtol=1e-4), err

    print("KERNEL_OK")
</pallas_src>

<mosaic_0001>
module attributes {stable_mosaic.version = 11 : i64} {
  func.func @_decoder_step_kernel(%arg0: i32, %arg1: memref<2x1xi32, #tpu.memory_space<vmem>>, %arg2: memref<2x32xf32, #tpu.memory_space<vmem>>, %arg3: memref<2x32xf32, #tpu.memory_space<vmem>>, %arg4: memref<2x8x32xf32, #tpu.memory_space<vmem>>, %arg5: memref<256x32xf32, #tpu.memory_space<vmem>>, %arg6: memref<32x32xf32, #tpu.memory_space<vmem>>, %arg7: memref<32x32xf32, #tpu.memory_space<vmem>>, %arg8: memref<1x32xf32, #tpu.memory_space<vmem>>, %arg9: memref<1x32xf32, #tpu.memory_space<vmem>>, %arg10: memref<32x128xf32, #tpu.memory_space<vmem>>, %arg11: memref<32x128xf32, #tpu.memory_space<vmem>>, %arg12: memref<32x128xf32, #tpu.memory_space<vmem>>, %arg13: memref<1x128xf32, #tpu.memory_space<vmem>>, %arg14: memref<32x256xf32, #tpu.memory_space<vmem>>, %arg15: memref<1x256xf32, #tpu.memory_space<vmem>>, %arg16: memref<2x256xf32, #tpu.memory_space<vmem>>, %arg17: memref<2x32xf32, #tpu.memory_space<vmem>>, %arg18: memref<2x32xf32, #tpu.memory_space<vmem>>) attributes {dimension_semantics = [#tpu.dimension_semantics<parallel>], iteration_bounds = array<i64: 1>, scalar_prefetch = 0 : i64, scratch_operands = 0 : i64, tpu.core_type = #tpu.core_type<tc>, window_params = [{transform_indices = @transform_0, window_bounds = array<i64: 2, 1>}, {transform_indices = @transform_1, window_bounds = array<i64: 2, 32>}, {transform_indices = @transform_2, window_bounds = array<i64: 2, 32>}, {transform_indices = @transform_3, window_bounds = array<i64: 2, 8, 32>}, {pipeline_mode = #tpu.pipeline_mode<synchronous>, transform_indices = @transform_4, window_bounds = array<i64: 256, 32>}, {pipeline_mode = #tpu.pipeline_mode<synchronous>, transform_indices = @transform_5, window_bounds = array<i64: 32, 32>}, {pipeline_mode = #tpu.pipeline_mode<synchronous>, transform_indices = @transform_6, window_bounds = array<i64: 32, 32>}, {pipeline_mode = #tpu.pipeline_mode<synchronous>, transform_indices = @transform_7, window_bounds = array<i64: 1, 32>}, {pipeline_mode = #tpu.pipeline_mode<synchronous>, transform_indices = @transform_8, window_bounds = array<i64: 1, 32>}, {pipeline_mode = #tpu.pipeline_mode<synchronous>, transform_indices = @transform_9, window_bounds = array<i64: 32, 128>}, {pipeline_mode = #tpu.pipeline_mode<synchronous>, transform_indices = @transform_10, window_bounds = array<i64: 32, 128>}, {pipeline_mode = #tpu.pipeline_mode<synchronous>, transform_indices = @transform_11, window_bounds = array<i64: 32, 128>}, {pipeline_mode = #tpu.pipeline_mode<synchronous>, transform_indices = @transform_12, window_bounds = array<i64: 1, 128>}, {pipeline_mode = #tpu.pipeline_mode<synchronous>, transform_indices = @transform_13, window_bounds = array<i64: 32, 256>}, {pipeline_mode = #tpu.pipeline_mode<synchronous>, transform_indices = @transform_14, window_bounds = array<i64: 1, 256>}, {transform_indices = @transform_15, window_bounds = array<i64: 2, 256>}, {transform_indices = @transform_16, window_bounds = array<i64: 2, 32>}, {transform_indices = @transform_17, window_bounds = array<i64: 2, 32>}]} {
    %c0 = arith.constant 0 : index
    %c0_0 = arith.constant 0 : index
    %0 = vector.load %arg2[%c0, %c0_0] : memref<2x32xf32, #tpu.memory_space<vmem>>, vector<2x32xf32>
    %c0_1 = arith.constant 0 : index
    %c0_2 = arith.constant 0 : index
    %1 = vector.load %arg3[%c0_1, %c0_2] : memref<2x32xf32, #tpu.memory_space<vmem>>, vector<2x32xf32>
    %c0_3 = arith.constant 0 : index
    %c0_4 = arith.constant 0 : index
    %c0_5 = arith.constant 0 : index
    %2 = vector.load %arg4[%c0_3, %c0_4, %c0_5] : memref<2x8x32xf32, #tpu.memory_space<vmem>>, vector<2x8x32xf32>
    %c0_6 = arith.constant 0 : index
    %c0_7 = arith.constant 0 : index
    %3 = vector.load %arg1[%c0_6, %c0_7] : memref<2x1xi32, #tpu.memory_space<vmem>>, vector<2x1xi32>
    %4 = tpu.iota {dimensions = array<i32: 1>} : vector<2x256xi32>
    %5 = vector.broadcast %3 : vector<2x1xi32> to vector<2x256xi32>
    %6 = arith.cmpi eq, %4, %5 : vector<2x256xi32>
    %7 = arith.extui %6 : vector<2x256xi1> to vector<2x256xi32>
    %8 = arith.sitofp %7 : vector<2x256xi32> to vector<2x256xf32>
    %c0_8 = arith.constant 0 : index
    %c0_9 = arith.constant 0 : index
    %9 = vector.load %arg5[%c0_8, %c0_9] : memref<256x32xf32, #tpu.memory_space<vmem>>, vector<256x32xf32>
    %cst = arith.constant dense<0.000000e+00> : vector<2x32xf32>
    %10 = tpu.matmul %8, %9, %cst {dimension_numbers = #tpu.dot_dimension_numbers<[1], [0], [0], [1], [0, 0, 1, 1], [], []>} : vector<2x256xf32>, vector<256x32xf32>, vector<2x32xf32> -> vector<2x32xf32>
    %c0_10 = arith.constant 0 : index
    %c0_11 = arith.constant 0 : index
    %11 = vector.load %arg6[%c0_10, %c0_11] : memref<32x32xf32, #tpu.memory_space<vmem>>, vector<32x32xf32>
    %cst_12 = arith.constant dense<0.000000e+00> : vector<2x32xf32>
    %12 = tpu.matmul %0, %11, %cst_12 {dimension_numbers = #tpu.dot_dimension_numbers<[1], [0], [0], [1], [0, 0, 1, 1], [], []>} : vector<2x32xf32>, vector<32x32xf32>, vector<2x32xf32> -> vector<2x32xf32>
    %13 = vector.shape_cast %2 : vector<2x8x32xf32> to vector<16x32xf32>
    %c0_13 = arith.constant 0 : index
    %c0_14 = arith.constant 0 : index
    %14 = vector.load %arg7[%c0_13, %c0_14] : memref<32x32xf32, #tpu.memory_space<vmem>>, vector<32x32xf32>
    %cst_15 = arith.constant dense<0.000000e+00> : vector<16x32xf32>
    %15 = tpu.matmul %13, %14, %cst_15 {dimension_numbers = #tpu.dot_dimension_numbers<[1], [0], [0], [1], [0, 0, 1, 1], [], []>} : vector<16x32xf32>, vector<32x32xf32>, vector<16x32xf32> -> vector<16x32xf32>
    %16 = vector.shape_cast %15 : vector<16x32xf32> to vector<2x8x32xf32>
    %17 = vector.shape_cast %12 : vector<2x32xf32> to vector<2x1x32xf32>
    %18 = vector.broadcast %17 : vector<2x1x32xf32> to vector<2x8x32xf32>
    %19 = arith.addf %16, %18 : vector<2x8x32xf32>
    %c0_16 = arith.constant 0 : index
    %c0_17 = arith.constant 0 : index
    %20 = vector.load %arg8[%c0_16, %c0_17] : memref<1x32xf32, #tpu.memory_space<vmem>>, vector<1x32xf32>
    %21 = vector.shape_cast %20 : vector<1x32xf32> to vector<1x1x32xf32>
    %22 = vector.broadcast %21 : vector<1x1x32xf32> to vector<2x8x32xf32>
    %23 = arith.addf %19, %22 : vector<2x8x32xf32>
    %cst_18 = arith.constant 0.000000e+00 : f32
    %24 = vector.broadcast %cst_18 : f32 to vector<2x8x32xf32>
    %25 = arith.maximumf %23, %24 : vector<2x8x32xf32>
    %c0_19 = arith.constant 0 : index
    %c0_20 = arith.constant 0 : index
    %26 = vector.load %arg9[%c0_19, %c0_20] : memref<1x32xf32, #tpu.memory_space<vmem>>, vector<1x32xf32>
    %27 = vector.shape_cast %26 : vector<1x32xf32> to vector<1x1x32xf32>
    %28 = vector.broadcast %27 : vector<1x1x32xf32> to vector<2x8x32xf32>
    %29 = arith.mulf %25, %28 : vector<2x8x32xf32>
    %cst_21 = arith.constant dense<0.000000e+00> : vector<2x8xf32>
    %30 = vector.multi_reduction <add>, %29, %cst_21 [2] : vector<2x8x32xf32> to vector<2x8xf32>
    %cst_22 = arith.constant dense<0xFF800000> : vector<2xf32>
    %31 = vector.multi_reduction <maximumf>, %30, %cst_22 [1] : vector<2x8xf32> to vector<2xf32>
    %32 = vector.shape_cast %31 : vector<2xf32> to vector<2x1xf32>
    %33 = vector.broadcast %32 : vector<2x1xf32> to vector<2x8xf32>
    %34 = arith.subf %30, %33 : vector<2x8xf32>
    %35 = math.exp %34 : vector<2x8xf32>
    %cst_23 = arith.constant dense<0.000000e+00> : vector<2xf32>
    %36 = vector.multi_reduction <add>, %35, %cst_23 [1] : vector<2x8xf32> to vector<2xf32>
    %37 = vector.shape_cast %36 : vector<2xf32> to vector<2x1xf32>
    %38 = tpu.reciprocal %37 {approx = true} : vector<2x1xf32> -> vector<2x1xf32>
    %39 = arith.mulf %37, %38 : vector<2x1xf32>
    %cst_24 = arith.constant 2.000000e+00 : f32
    %40 = vector.broadcast %cst_24 : f32 to vector<2x1xf32>
    %41 = arith.subf %40, %39 : vector<2x1xf32>
    %42 = arith.mulf %38, %41 : vector<2x1xf32>
    %43 = vector.broadcast %42 : vector<2x1xf32> to vector<2x8xf32>
    %44 = arith.mulf %35, %43 : vector<2x8xf32>
    %45 = vector.shape_cast %44 : vector<2x8xf32> to vector<2x1x8xf32>
    "tpu.trace_start"() <{level = 10 : i32, message = "bos,bsh->boh"}> : () -> ()
    %cst_25 = arith.constant dense<0.000000e+00> : vector<2x1x32xf32>
    %46 = tpu.matmul %45, %2, %cst_25 {dimension_numbers = #tpu.dot_dimension_numbers<[2], [1], [1], [2], [0, 0, 0, 1, 1, 2], [0], [0]>} : vector<2x1x8xf32>, vector<2x8x32xf32>, vector<2x1x32xf32> -> vector<2x1x32xf32>
    "tpu.trace_stop"() : () -> ()
    %47 = vector.shape_cast %46 : vector<2x1x32xf32> to vector<2x32xf32>
    %c0_26 = arith.constant 0 : index
    %c0_27 = arith.constant 0 : index
    %48 = vector.load %arg10[%c0_26, %c0_27] : memref<32x128xf32, #tpu.memory_space<vmem>>, vector<32x128xf32>
    %cst_28 = arith.constant dense<0.000000e+00> : vector<2x128xf32>
    %49 = tpu.matmul %47, %48, %cst_28 {dimension_numbers = #tpu.dot_dimension_numbers<[1], [0], [0], [1], [0, 0, 1, 1], [], []>} : vector<2x32xf32>, vector<32x128xf32>, vector<2x128xf32> -> vector<2x128xf32>
    %c0_29 = arith.constant 0 : index
    %c0_30 = arith.constant 0 : index
    %50 = vector.load %arg11[%c0_29, %c0_30] : memref<32x128xf32, #tpu.memory_space<vmem>>, vector<32x128xf32>
    %cst_31 = arith.constant dense<0.000000e+00> : vector<2x128xf32>
    %51 = tpu.matmul %10, %50, %cst_31 {dimension_numbers = #tpu.dot_dimension_numbers<[1], [0], [0], [1], [0, 0, 1, 1], [], []>} : vector<2x32xf32>, vector<32x128xf32>, vector<2x128xf32> -> vector<2x128xf32>
    %52 = arith.addf %49, %51 : vector<2x128xf32>
    %c0_32 = arith.constant 0 : index
    %c0_33 = arith.constant 0 : index
    %53 = vector.load %arg12[%c0_32, %c0_33] : memref<32x128xf32, #tpu.memory_space<vmem>>, vector<32x128xf32>
    %cst_34 = arith.constant dense<0.000000e+00> : vector<2x128xf32>
    %54 = tpu.matmul %0, %53, %cst_34 {dimension_numbers = #tpu.dot_dimension_numbers<[1], [0], [0], [1], [0, 0, 1, 1], [], []>} : vector<2x32xf32>, vector<32x128xf32>, vector<2x128xf32> -> vector<2x128xf32>
    %55 = arith.addf %52, %54 : vector<2x128xf32>
    %c0_35 = arith.constant 0 : index
    %c0_36 = arith.constant 0 : index
    %56 = vector.load %arg13[%c0_35, %c0_36] : memref<1x128xf32, #tpu.memory_space<vmem>>, vector<1x128xf32>
    %57 = vector.broadcast %56 : vector<1x128xf32> to vector<2x128xf32>
    %58 = arith.addf %55, %57 : vector<2x128xf32>
    %59 = vector.extract_strided_slice %58 {offsets = [0, 0], sizes = [2, 32], strides = [1, 1]} : vector<2x128xf32> to vector<2x32xf32>
    %cst_37 = arith.constant 0.000000e+00 : f32
    %60 = vector.broadcast %cst_37 : f32 to vector<2x32xf32>
    %61 = arith.subf %60, %59 : vector<2x32xf32>
    %62 = math.exp %61 : vector<2x32xf32>
    %cst_38 = arith.constant 1.000000e+00 : f32
    %63 = vector.broadcast %cst_38 : f32 to vector<2x32xf32>
    %64 = arith.addf %63, %62 : vector<2x32xf32>
    %cst_39 = arith.constant 1.000000e+00 : f32
    %65 = vector.broadcast %cst_39 : f32 to vector<2x32xf32>
    %66 = arith.divf %65, %64 : vector<2x32xf32>
    %67 = vector.extract_strided_slice %58 {offsets = [0, 32], sizes = [2, 32], strides = [1, 1]} : vector<2x128xf32> to vector<2x32xf32>
    %cst_40 = arith.constant 0.000000e+00 : f32
    %68 = vector.broadcast %cst_40 : f32 to vector<2x32xf32>
    %69 = arith.subf %68, %67 : vector<2x32xf32>
    %70 = math.exp %69 : vector<2x32xf32>
    %cst_41 = arith.constant 1.000000e+00 : f32
    %71 = vector.broadcast %cst_41 : f32 to vector<2x32xf32>
    %72 = arith.addf %71, %70 : vector<2x32xf32>
    %cst_42 = arith.constant 1.000000e+00 : f32
    %73 = vector.broadcast %cst_42 : f32 to vector<2x32xf32>
    %74 = arith.divf %73, %72 : vector<2x32xf32>
    %75 = vector.extract_strided_slice %58 {offsets = [0, 64], sizes = [2, 32], strides = [1, 1]} : vector<2x128xf32> to vector<2x32xf32>
    %76 = math.tanh %75 : vector<2x32xf32>
    %77 = vector.extract_strided_slice %58 {offsets = [0, 96], sizes = [2, 32], strides = [1, 1]} : vector<2x128xf32> to vector<2x32xf32>
    %cst_43 = arith.constant 0.000000e+00 : f32
    %78 = vector.broadcast %cst_43 : f32 to vector<2x32xf32>
    %79 = arith.subf %78, %77 : vector<2x32xf32>
    %80 = math.exp %79 : vector<2x32xf32>
    %cst_44 = arith.constant 1.000000e+00 : f32
    %81 = vector.broadcast %cst_44 : f32 to vector<2x32xf32>
    %82 = arith.addf %81, %80 : vector<2x32xf32>
    %cst_45 = arith.constant 1.000000e+00 : f32
    %83 = vector.broadcast %cst_45 : f32 to vector<2x32xf32>
    %84 = arith.divf %83, %82 : vector<2x32xf32>
    %85 = arith.mulf %74, %1 : vector<2x32xf32>
    %86 = arith.mulf %66, %76 : vector<2x32xf32>
    %87 = arith.addf %85, %86 : vector<2x32xf32>
    %88 = math.tanh %87 : vector<2x32xf32>
    %89 = arith.mulf %84, %88 : vector<2x32xf32>
    %c0_46 = arith.constant 0 : index
    %c0_47 = arith.constant 0 : index
    %90 = vector.load %arg14[%c0_46, %c0_47] : memref<32x256xf32, #tpu.memory_space<vmem>>, vector<32x256xf32>
    %cst_48 = arith.constant dense<0.000000e+00> : vector<2x256xf32>
    %91 = tpu.matmul %89, %90, %cst_48 {dimension_numbers = #tpu.dot_dimension_numbers<[1], [0], [0], [1], [0, 0, 1, 1], [], []>} : vector<2x32xf32>, vector<32x256xf32>, vector<2x256xf32> -> vector<2x256xf32>
    %c0_49 = arith.constant 0 : index
    %c0_50 = arith.constant 0 : index
    %92 = vector.load %arg15[%c0_49, %c0_50] : memref<1x256xf32, #tpu.memory_space<vmem>>, vector<1x256xf32>
    %93 = vector.broadcast %92 : vector<1x256xf32> to vector<2x256xf32>
    %94 = arith.addf %91, %93 : vector<2x256xf32>
    %c0_51 = arith.constant 0 : index
    %c0_52 = arith.constant 0 : index
    %95 = vector.load %arg16[%c0_51, %c0_52] : memref<2x256xf32, #tpu.memory_space<vmem>>, vector<2x256xf32>
    tpu.vector_store %arg16[%c0_51, %c0_52], %94 {strides = array<i32>} : memref<2x256xf32, #tpu.memory_space<vmem>>, vector<2x256xf32>,
    %c0_53 = arith.constant 0 : index
    %c0_54 = arith.constant 0 : index
    %96 = vector.load %arg17[%c0_53, %c0_54] : memref<2x32xf32, #tpu.memory_space<vmem>>, vector<2x32xf32>
    tpu.vector_store %arg17[%c0_53, %c0_54], %89 {strides = array<i32>} : memref<2x32xf32, #tpu.memory_space<vmem>>, vector<2x32xf32>,
    %c0_55 = arith.constant 0 : index
    %c0_56 = arith.constant 0 : index
    %97 = vector.load %arg18[%c0_55, %c0_56] : memref<2x32xf32, #tpu.memory_space<vmem>>, vector<2x32xf32>
    tpu.vector_store %arg18[%c0_55, %c0_56], %87 {strides = array<i32>} : memref<2x32xf32, #tpu.memory_space<vmem>>, vector<2x32xf32>,
    return
  }
  func.func @transform_0(%arg0: i32) -> (i32, i32) {
    %c0_i32 = arith.constant 0 : i32
    %c0_i32_0 = arith.constant 0 : i32
    return %arg0, %c0_i32 : i32, i32
  }
  func.func @transform_1(%arg0: i32) -> (i32, i32) {
    %c0_i32 = arith.constant 0 : i32
    %c0_i32_0 = arith.constant 0 : i32
    return %arg0, %c0_i32 : i32, i32
  }
  func.func @transform_2(%arg0: i32) -> (i32, i32) {
    %c0_i32 = arith.constant 0 : i32
    %c0_i32_0 = arith.constant 0 : i32
    return %arg0, %c0_i32 : i32, i32
  }
  func.func @transform_3(%arg0: i32) -> (i32, i32, i32) {
    %c0_i32 = arith.constant 0 : i32
    %c0_i32_0 = arith.constant 0 : i32
    %c0_i32_1 = arith.constant 0 : i32
    return %arg0, %c0_i32, %c0_i32_0 : i32, i32, i32
  }
  func.func @transform_4(%arg0: i32) -> (i32, i32) {
    %c0_i32 = arith.constant 0 : i32
    %c0_i32_0 = arith.constant 0 : i32
    %c0_i32_1 = arith.constant 0 : i32
    return %c0_i32, %c0_i32_0 : i32, i32
  }
  func.func @transform_5(%arg0: i32) -> (i32, i32) {
    %c0_i32 = arith.constant 0 : i32
    %c0_i32_0 = arith.constant 0 : i32
    %c0_i32_1 = arith.constant 0 : i32
    return %c0_i32, %c0_i32_0 : i32, i32
  }
  func.func @transform_6(%arg0: i32) -> (i32, i32) {
    %c0_i32 = arith.constant 0 : i32
    %c0_i32_0 = arith.constant 0 : i32
    %c0_i32_1 = arith.constant 0 : i32
    return %c0_i32, %c0_i32_0 : i32, i32
  }
  func.func @transform_7(%arg0: i32) -> (i32, i32) {
    %c0_i32 = arith.constant 0 : i32
    %c0_i32_0 = arith.constant 0 : i32
    %c0_i32_1 = arith.constant 0 : i32
    return %c0_i32, %c0_i32_0 : i32, i32
  }
  func.func @transform_8(%arg0: i32) -> (i32, i32) {
    %c0_i32 = arith.constant 0 : i32
    %c0_i32_0 = arith.constant 0 : i32
    %c0_i32_1 = arith.constant 0 : i32
    return %c0_i32, %c0_i32_0 : i32, i32
  }
  func.func @transform_9(%arg0: i32) -> (i32, i32) {
    %c0_i32 = arith.constant 0 : i32
    %c0_i32_0 = arith.constant 0 : i32
    %c0_i32_1 = arith.constant 0 : i32
    return %c0_i32, %c0_i32_0 : i32, i32
  }
  func.func @transform_10(%arg0: i32) -> (i32, i32) {
    %c0_i32 = arith.constant 0 : i32
    %c0_i32_0 = arith.constant 0 : i32
    %c0_i32_1 = arith.constant 0 : i32
    return %c0_i32, %c0_i32_0 : i32, i32
  }
  func.func @transform_11(%arg0: i32) -> (i32, i32) {
    %c0_i32 = arith.constant 0 : i32
    %c0_i32_0 = arith.constant 0 : i32
    %c0_i32_1 = arith.constant 0 : i32
    return %c0_i32, %c0_i32_0 : i32, i32
  }
  func.func @transform_12(%arg0: i32) -> (i32, i32) {
    %c0_i32 = arith.constant 0 : i32
    %c0_i32_0 = arith.constant 0 : i32
    %c0_i32_1 = arith.constant 0 : i32
    return %c0_i32, %c0_i32_0 : i32, i32
  }
  func.func @transform_13(%arg0: i32) -> (i32, i32) {
    %c0_i32 = arith.constant 0 : i32
    %c0_i32_0 = arith.constant 0 : i32
    %c0_i32_1 = arith.constant 0 : i32
    return %c0_i32, %c0_i32_0 : i32, i32
  }
  func.func @transform_14(%arg0: i32) -> (i32, i32) {
    %c0_i32 = arith.constant 0 : i32
    %c0_i32_0 = arith.constant 0 : i32
    %c0_i32_1 = arith.constant 0 : i32
    return %c0_i32, %c0_i32_0 : i32, i32
  }
  func.func @transform_15(%arg0: i32) -> (i32, i32) {
    %c0_i32 = arith.constant 0 : i32
    %c0_i32_0 = arith.constant 0 : i32
    return %arg0, %c0_i32 : i32, i32
  }
  func.func @transform_16(%arg0: i32) -> (i32, i32) {
    %c0_i32 = arith.constant 0 : i32
    %c0_i32_0 = arith.constant 0 : i32
    return %arg0, %c0_i32 : i32, i32
  }
  func.func @transform_17(%arg0: i32) -> (i32, i32) {
    %c0_i32 = arith.constant 0 : i32
    %c0_i32_0 = arith.constant 0 : i32
    return %arg0, %c0_i32 : i32, i32
  }
}

</mosaic_0001>

<llo_original>
// kernel: tpu_custom_call.1
$region0: #{tpu_custom_call.1}
  #allocation0 [shape = 'u32[]', space=smem, size = 0x4, offset = 0x4, fixed_abs, tag = 'smem constant byte address 0x4 - core index']
  #allocation1 [shape = 'u32[144,128]{1,0:T(1,128)}', space=vmem, size = 0x12000, scoped, tag = 'internal scratch']
  %s0 = inlined_call_operand.vmem [shape: s32[2,1], index: 0, kind: input, shape index: {}]
  %s1 = inlined_call_operand.vmem [shape: f32[2,32], index: 1, kind: input, shape index: {}]
  %s2 = inlined_call_operand.vmem [shape: f32[2,32], index: 2, kind: input, shape index: {}]
  %s3 = inlined_call_operand.vmem [shape: f32[2,8,32], index: 3, kind: input, shape index: {}]
  %s4 = inlined_call_operand.vmem [shape: f32[256,32], index: 4, kind: input, shape index: {}]
  %s5 = inlined_call_operand.vmem [shape: f32[32,32], index: 5, kind: input, shape index: {}]
  %s6 = inlined_call_operand.vmem [shape: f32[32,32], index: 6, kind: input, shape index: {}]
  %s7 = inlined_call_operand.vmem [shape: f32[1,32], index: 7, kind: input, shape index: {}]
  %s8 = inlined_call_operand.vmem [shape: f32[1,32], index: 8, kind: input, shape index: {}]
  %s9 = inlined_call_operand.vmem [shape: f32[32,128], index: 9, kind: input, shape index: {}]
  %s10 = inlined_call_operand.vmem [shape: f32[32,128], index: 10, kind: input, shape index: {}]
  %s11 = inlined_call_operand.vmem [shape: f32[32,128], index: 11, kind: input, shape index: {}]
  %s12 = inlined_call_operand.vmem [shape: f32[1,128], index: 12, kind: input, shape index: {}]
  %s13 = inlined_call_operand.vmem [shape: f32[32,256], index: 13, kind: input, shape index: {}]
  %s14 = inlined_call_operand.vmem [shape: f32[1,256], index: 14, kind: input, shape index: {}]
  %s15 = inlined_call_operand.hbm [shape: f32[2,256], index: 15, kind: output, shape index: {0}]
  %s16 = inlined_call_operand.hbm [shape: f32[2,32], index: 16, kind: output, shape index: {1}]
  %s17 = inlined_call_operand.hbm [shape: f32[2,32], index: 17, kind: output, shape index: {2}]
  %18 = xla_tuple %s15, %s16, %s17
  %s19 = sld [smem:[#allocation0]]
  $region86: #{tpu_custom_call.1} parent=0
    _
  %s21 = ssub.s32 1, %s19
  %s22 = scalar_select 0, %s21, %s19
  $region1: #{tpu_custom_call.1} parent=0
    #allocation2 [shape = 'u8[2048]{0}', space=vmem, size = 0x800, scoped, tag = 'output window, operand 0, single buffered']
    #allocation3 [shape = 's32[1]{0}', space=sflag, size = 0x4, scoped, tag = 'scoped memory for tpu_custom_call.1']
    #allocation4 [shape = 'u8[1024]{0}', space=vmem, size = 0x400, scoped, tag = 'output window, operand 1, single buffered']
    #allocation5 [shape = 's32[1]{0}', space=sflag, size = 0x4, scoped, tag = 'scoped memory for tpu_custom_call.1']
    #allocation6 [shape = 'u8[1024]{0}', space=vmem, size = 0x400, scoped, tag = 'output window, operand 2, single buffered']
    %23 = vsyncpa [#allocation3], 0
    %24 = vsyncpa [#allocation5], 0
    // Predicated region
    $region2: #{tpu_custom_call.1} parent=1 // pred_check
      _
    $region3: #{tpu_custom_call.1} parent=1 // pred_check_branch
      %26 = sbr.rel (0) target = $region5
    $region4: #{tpu_custom_call.1} parent=1 // pred_region
      _
    $region5: #{tpu_custom_call.1} parent=1 // pred_fallthru
      _
    // Predicated region
    $region6: #{tpu_custom_call.1} parent=1 // pred_check
      _
    $region7: #{tpu_custom_call.1} parent=1 // pred_check_branch
      %28 = sbr.rel (0) target = $region9
    $region8: #{tpu_custom_call.1} parent=1 // pred_region
      _
    $region9: #{tpu_custom_call.1} parent=1 // pred_fallthru
      _
    // Predicated region
    $region10: #{tpu_custom_call.1} parent=1 // pred_check
      _
    $region11: #{tpu_custom_call.1} parent=1 // pred_check_branch
      %30 = sbr.rel (0) target = $region13
    $region12: #{tpu_custom_call.1} parent=1 // pred_region
      _
    $region13: #{tpu_custom_call.1} parent=1 // pred_fallthru
      _
    // Predicated region
    $region14: #{tpu_custom_call.1} parent=1 // pred_check
      _
    $region15: #{tpu_custom_call.1} parent=1 // pred_check_branch
      %32 = sbr.rel (0) target = $region17
    $region16: #{tpu_custom_call.1} parent=1 // pred_region
      _
    $region17: #{tpu_custom_call.1} parent=1 // pred_fallthru
      _
    // Predicated region
    $region18: #{tpu_custom_call.1} parent=1 // pred_check
      _
    $region19: #{tpu_custom_call.1} parent=1 // pred_check_branch
      %34 = sbr.rel (0) target = $region21
    $region20: #{tpu_custom_call.1} parent=1 // pred_region
      _
    $region21: #{tpu_custom_call.1} parent=1 // pred_fallthru
      _
    // Predicated region
    $region22: #{tpu_custom_call.1} parent=1 // pred_check
      _
    $region23: #{tpu_custom_call.1} parent=1 // pred_check_branch
      %36 = sbr.rel (0) target = $region25
    $region24: #{tpu_custom_call.1} parent=1 // pred_region
      _
    $region25: #{tpu_custom_call.1} parent=1 // pred_fallthru
      _
    // Predicated region
    $region26: #{tpu_custom_call.1} parent=1 // pred_check
      _
    $region27: #{tpu_custom_call.1} parent=1 // pred_check_branch
      %38 = sbr.rel (0) target = $region29
    $region28: #{tpu_custom_call.1} parent=1 // pred_region
      _
    $region29: #{tpu_custom_call.1} parent=1 // pred_fallthru
      _
    // Predicated region
    $region30: #{tpu_custom_call.1} parent=1 // pred_check
      _
    $region31: #{tpu_custom_call.1} parent=1 // pred_check_branch
      %40 = sbr.rel (0) target = $region33
    $region32: #{tpu_custom_call.1} parent=1 // pred_region
      _
    $region33: #{tpu_custom_call.1} parent=1 // pred_fallthru
      _
    // Predicated region
    $region34: #{tpu_custom_call.1} parent=1 // pred_check
      _
    $region35: #{tpu_custom_call.1} parent=1 // pred_check_branch
      %42 = sbr.rel (0) target = $region37
    $region36: #{tpu_custom_call.1} parent=1 // pred_region
      _
    $region37: #{tpu_custom_call.1} parent=1 // pred_fallthru
      _
    // Predicated region
    $region38: #{tpu_custom_call.1} parent=1 // pred_check
      _
    $region39: #{tpu_custom_call.1} parent=1 // pred_check_branch
      %44 = sbr.rel (0) target = $region41
    $region40: #{tpu_custom_call.1} parent=1 // pred_region
      _
    $region41: #{tpu_custom_call.1} parent=1 // pred_fallthru
      _
    // Predicated region
    $region42: #{tpu_custom_call.1} parent=1 // pred_check
      _
    $region43: #{tpu_custom_call.1} parent=1 // pred_check_branch
      %46 = sbr.rel (0) target = $region45
    $region44: #{tpu_custom_call.1} parent=1 // pred_region
      _
    $region45: #{tpu_custom_call.1} parent=1 // pred_fallthru
      _
    // Predicated region
    $region46: #{tpu_custom_call.1} parent=1 // pred_check
      _
    $region47: #{tpu_custom_call.1} parent=1 // pred_check_branch
      %48 = sbr.rel (0) target = $region49
    $region48: #{tpu_custom_call.1} parent=1 // pred_region
      _
    $region49: #{tpu_custom_call.1} parent=1 // pred_fallthru
      _
    // Predicated region
    $region50: #{tpu_custom_call.1} parent=1 // pred_check
      _
    $region51: #{tpu_custom_call.1} parent=1 // pred_check_branch
      %50 = sbr.rel (0) target = $region53
    $region52: #{tpu_custom_call.1} parent=1 // pred_region
      _
    $region53: #{tpu_custom_call.1} parent=1 // pred_fallthru
      _
    // Predicated region
    $region54: #{tpu_custom_call.1} parent=1 // pred_check
      _
    $region55: #{tpu_custom_call.1} parent=1 // pred_check_branch
      %52 = sbr.rel (0) target = $region57
    $region56: #{tpu_custom_call.1} parent=1 // pred_region
      _
    $region57: #{tpu_custom_call.1} parent=1 // pred_fallthru
      _
    // Predicated region
    $region58: #{tpu_custom_call.1} parent=1 // pred_check
      _
    $region59: #{tpu_custom_call.1} parent=1 // pred_check_branch
      %54 = sbr.rel (0) target = $region61
    $region60: #{tpu_custom_call.1} parent=1 // pred_region
      _
    $region61: #{tpu_custom_call.1} parent=1 // pred_fallthru
      _
    %v55 = vld [vmem:[%s1] sm:$0x3]
    %v56 = vld [vmem:[%s2] sm:$0x3]
    %v57 = vld [vmem:[%s3] sm:$0xff]
    %v58 = vld [vmem:[%s3 + $0x8] sm:$0xff]
    %v59 = vld [vmem:[%s0] sm:$0x3]
    %v60 = vlaneseq
    %v61 = vand.u32 %v60, 127
    %v62 = vadd.s32 %v61, 128
    %63 = vset.pattern.permute.xlu0 0
    %64 = vperm.xlu0 %63, %v59
    %v65 = vpop.permute.xlu0 %64
    %vm66 = vcmp.eq.s32.totalorder %v61, %v65
    %vm67 = vcmp.eq.s32.totalorder %v62, %v65
    %v68 = vsel %vm66, 1, 0
    %v69 = vsel %vm67, 1, 0
    %v70 = vcvt.s32.f32 %v68
    %v71 = vcvt.s32.f32 %v69
    %v72 = vld [vmem:[%s4] sm:$0xff]
    %v73 = vld [vmem:[%s4 + $0x8] sm:$0xff]
    %v74 = vld [vmem:[%s4 + $0x10] sm:$0xff]
    %v75 = vld [vmem:[%s4 + $0x18] sm:$0xff]
    %v76 = vld [vmem:[%s4 + $0x20] sm:$0xff]
    %v77 = vld [vmem:[%s4 + $0x28] sm:$0xff]
    %v78 = vld [vmem:[%s4 + $0x30] sm:$0xff]
    %v79 = vld [vmem:[%s4 + $0x38] sm:$0xff]
    %v80 = vld [vmem:[%s4 + $0x40] sm:$0xff]
    %v81 = vld [vmem:[%s4 + $0x48] sm:$0xff]
    %v82 = vld [vmem:[%s4 + $0x50] sm:$0xff]
    %v83 = vld [vmem:[%s4 + $0x58] sm:$0xff]
    %v84 = vld [vmem:[%s4 + $0x60] sm:$0xff]
    %v85 = vld [vmem:[%s4 + $0x68] sm:$0xff]
    %v86 = vld [vmem:[%s4 + $0x70] sm:$0xff]
    %v87 = vld [vmem:[%s4 + $0x78] sm:$0xff]
    %v88 = vld [vmem:[%s4 + $0x80] sm:$0xff]
    %v89 = vld [vmem:[%s4 + $0x88] sm:$0xff]
    %v90 = vld [vmem:[%s4 + $0x90] sm:$0xff]
    %v91 = vld [vmem:[%s4 + $0x98] sm:$0xff]
    %v92 = vld [vmem:[%s4 + $0xa0] sm:$0xff]
    %v93 = vld [vmem:[%s4 + $0xa8] sm:$0xff]
    %v94 = vld [vmem:[%s4 + $0xb0] sm:$0xff]
    %v95 = vld [vmem:[%s4 + $0xb8] sm:$0xff]
    %v96 = vld [vmem:[%s4 + $0xc0] sm:$0xff]
    %v97 = vld [vmem:[%s4 + $0xc8] sm:$0xff]
    %v98 = vld [vmem:[%s4 + $0xd0] sm:$0xff]
    %v99 = vld [vmem:[%s4 + $0xd8] sm:$0xff]
    %v100 = vld [vmem:[%s4 + $0xe0] sm:$0xff]
    %v101 = vld [vmem:[%s4 + $0xe8] sm:$0xff]
    %v102 = vld [vmem:[%s4 + $0xf0] sm:$0xff]
    %v103 = vld [vmem:[%s4 + $0xf8] sm:$0xff]
    %104 = vmatprep.subr.mxu0 0.0
    %105 = vmatpush1.msra.mxu0 %v72
    %106 = vmatprep.subr.mxu0 0.0
    %107 = vmatpush1.msra.mxu0 %v73
    %108 = vmatprep.subr.mxu0 0.0
    %109 = vmatpush1.msra.mxu0 %v74
    %110 = vmatprep.subr.mxu0 0.0
    %111 = vmatpush1.msra.mxu0 %v75
    %112 = vmatprep.subr.mxu0 0.0
    %113 = vmatpush1.msra.mxu0 %v76
    %114 = vmatprep.subr.mxu0 0.0
    %115 = vmatpush1.msra.mxu0 %v77
    %116 = vmatprep.subr.mxu0 0.0
    %117 = vmatpush1.msra.mxu0 %v78
    %118 = vmatprep.subr.mxu0 0.0
    %119 = vmatpush1.msra.mxu0 %v79
    %120 = vmatprep.subr.mxu0 0.0
    %121 = vmatpush1.msra.mxu0 %v80
    %122 = vmatprep.subr.mxu0 0.0
    %123 = vmatpush1.msra.mxu0 %v81
    %124 = vmatprep.subr.mxu0 0.0
    %125 = vmatpush1.msra.mxu0 %v82
    %126 = vmatprep.subr.mxu0 0.0
    %127 = vmatpush1.msra.mxu0 %v83
    %128 = vmatprep.subr.mxu0 0.0
    %129 = vmatpush1.msra.mxu0 %v84
    %130 = vmatprep.subr.mxu0 0.0
    %131 = vmatpush1.msra.mxu0 %v85
    %132 = vmatprep.subr.mxu0 0.0
    %133 = vmatpush1.msra.mxu0 %v86
    %134 = vmatprep.subr.mxu0 0.0
    %135 = vmatpush1.msra.mxu0 %v87
    %136 = vmatprep.subr.mxu0 0.0
    %137 = vmatpush1.msra.mxu0 %v88
    %138 = vmatprep.subr.mxu0 0.0
    %139 = vmatpush1.msra.mxu0 %v89
    %140 = vmatprep.subr.mxu0 0.0
    %141 = vmatpush1.msra.mxu0 %v90
    %142 = vmatprep.subr.mxu0 0.0
    %143 = vmatpush1.msra.mxu0 %v91
    %144 = vmatprep.subr.mxu0 0.0
    %145 = vmatpush1.msra.mxu0 %v92
    %146 = vmatprep.subr.mxu0 0.0
    %147 = vmatpush1.msra.mxu0 %v93
    %148 = vmatprep.subr.mxu0 0.0
    %149 = vmatpush1.msra.mxu0 %v94
    %150 = vmatprep.subr.mxu0 0.0
    %151 = vmatpush1.msra.mxu0 %v95
    %152 = vmatprep.subr.mxu0 0.0
    %153 = vmatpush1.msra.mxu0 %v96
    %154 = vmatprep.subr.mxu0 0.0
    %155 = vmatpush1.msra.mxu0 %v97
    %156 = vmatprep.subr.mxu0 0.0
    %157 = vmatpush1.msra.mxu0 %v98
    %158 = vmatprep.subr.mxu0 0.0
    %159 = vmatpush1.msra.mxu0 %v99
    %160 = vmatprep.subr.mxu0 0.0
    %161 = vmatpush1.msra.mxu0 %v100
    %162 = vmatprep.subr.mxu0 0.0
    %163 = vmatpush1.msra.mxu0 %v101
    %164 = vmatprep.subr.mxu0 0.0
    %165 = vmatpush1.msra.mxu0 %v102
    %166 = vmatprep.subr.mxu0 0.0
    %167 = vmatpush1.msra.mxu0 %v103
    %168 = vmatprep.mubr.f32.mxu0 %v71
    %169 = vmatmul.mubr.f32.gmra.mrb[0].mxu0 %v70
    %v170 = vpop.f32.mrb[0].mxu0
    %v171 = vadd.f32 0.0, %v170
    %v172 = vpop.f32.mrb[0].mxu0
    %173 = vdwg.mxu0
    %v174 = vld [vmem:[%s5] sm:$0xff]
    %v175 = vld [vmem:[%s5 + $0x8] sm:$0xff]
    %v176 = vld [vmem:[%s5 + $0x10] sm:$0xff]
    %v177 = vld [vmem:[%s5 + $0x18] sm:$0xff]
    %vm178 = vcmask 261120
    %v180 = vsel %vm178, %v55, 0
    %182 = vmatprep.subr.mxu0 0.0
    %183 = vmatpush1.msra.mxu0 %v174
    %184 = vmatprep.subr.mxu0 0.0
    %185 = vmatpush1.msra.mxu0 %v175
    %186 = vmatprep.subr.mxu0 0.0
    %187 = vmatpush1.msra.mxu0 %v176
    %188 = vmatprep.subr.mxu0 0.0
    %189 = vmatpush1.msra.mxu0 %v177
    %190 = vmatprep.subr.mxu0 0.0
    %191 = vmatpush1.msra.mxu0 0.0
    %192 = vmatprep.subr.mxu0 0.0
    %193 = vmatpush1.msra.mxu0 0.0
    %194 = vmatprep.subr.mxu0 0.0
    %195 = vmatpush1.msra.mxu0 0.0
    %196 = vmatprep.subr.mxu0 0.0
    %197 = vmatpush1.msra.mxu0 0.0
    %198 = vmatprep.subr.mxu0 0.0
    %199 = vmatpush1.msra.mxu0 0.0
    %200 = vmatprep.subr.mxu0 0.0
    %201 = vmatpush1.msra.mxu0 0.0
    %202 = vmatprep.subr.mxu0 0.0
    %203 = vmatpush1.msra.mxu0 0.0
    %204 = vmatprep.subr.mxu0 0.0
    %205 = vmatpush1.msra.mxu0 0.0
    %206 = vmatprep.subr.mxu0 0.0
    %207 = vmatpush1.msra.mxu0 0.0
    %208 = vmatprep.subr.mxu0 0.0
    %209 = vmatpush1.msra.mxu0 0.0
    %210 = vmatprep.subr.mxu0 0.0
    %211 = vmatpush1.msra.mxu0 0.0
    %212 = vmatprep.subr.mxu0 0.0
    %213 = vmatpush1.msra.mxu0 0.0
    %214 = vmatprep.subr.mxu0 0.0
    %215 = vmatpush1.msra.mxu0 0.0
    %216 = vmatprep.subr.mxu0 0.0
    %217 = vmatpush1.msra.mxu0 0.0
    %218 = vmatprep.subr.mxu0 0.0
    %219 = vmatpush1.msra.mxu0 0.0
    %220 = vmatprep.subr.mxu0 0.0
    %221 = vmatpush1.msra.mxu0 0.0
    %222 = vmatprep.subr.mxu0 0.0
    %223 = vmatpush1.msra.mxu0 0.0
    %224 = vmatprep.subr.mxu0 0.0
    %225 = vmatpush1.msra.mxu0 0.0
    %226 = vmatprep.subr.mxu0 0.0
    %227 = vmatpush1.msra.mxu0 0.0
    %228 = vmatprep.subr.mxu0 0.0
    %229 = vmatpush1.msra.mxu0 0.0
    %230 = vmatprep.subr.mxu0 0.0
    %231 = vmatpush1.msra.mxu0 0.0
    %232 = vmatprep.subr.mxu0 0.0
    %233 = vmatpush1.msra.mxu0 0.0
    %234 = vmatprep.subr.mxu0 0.0
    %235 = vmatpush1.msra.mxu0 0.0
    %236 = vmatprep.subr.mxu0 0.0
    %237 = vmatpush1.msra.mxu0 0.0
    %238 = vmatprep.subr.mxu0 0.0
    %239 = vmatpush1.msra.mxu0 0.0
    %240 = vmatprep.subr.mxu0 0.0
    %241 = vmatpush1.msra.mxu0 0.0
    %242 = vmatprep.subr.mxu0 0.0
    %243 = vmatpush1.msra.mxu0 0.0
    %244 = vmatprep.subr.mxu0 0.0
    %245 = vmatpush1.msra.mxu0 0.0
    %246 = vmatprep.mubr.f32.mxu0 0.0
    %247 = vmatmul.mubr.f32.gmra.mrb[0].mxu0 %v180
    %v248 = vpop.f32.mrb[0].mxu0
    %v249 = vadd.f32 0.0, %v248
    %v250 = vpop.f32.mrb[0].mxu0
    %251 = vdwg.mxu0
    %v252 = vld [vmem:[%s6] sm:$0xff]
    %v253 = vld [vmem:[%s6 + $0x8] sm:$0xff]
    %v254 = vld [vmem:[%s6 + $0x10] sm:$0xff]
    %v255 = vld [vmem:[%s6 + $0x18] sm:$0xff]
    %v257 = vsel %vm178, %v57, 0
    %v260 = vsel %vm178, %v58, 0
    %262 = vmatprep.subr.mxu0 0.0
    %263 = vmatpush1.msra.mxu0 %v252
    %264 = vmatprep.subr.mxu0 0.0
    %265 = vmatpush1.msra.mxu0 %v253
    %266 = vmatprep.subr.mxu0 0.0
    %267 = vmatpush1.msra.mxu0 %v254
    %268 = vmatprep.subr.mxu0 0.0
    %269 = vmatpush1.msra.mxu0 %v255
    %270 = vmatprep.subr.mxu0 0.0
    %271 = vmatpush1.msra.mxu0 0.0
    %272 = vmatprep.subr.mxu0 0.0
    %273 = vmatpush1.msra.mxu0 0.0
    %274 = vmatprep.subr.mxu0 0.0
    %275 = vmatpush1.msra.mxu0 0.0
    %276 = vmatprep.subr.mxu0 0.0
    %277 = vmatpush1.msra.mxu0 0.0
    %278 = vmatprep.subr.mxu0 0.0
    %279 = vmatpush1.msra.mxu0 0.0
    %280 = vmatprep.subr.mxu0 0.0
    %281 = vmatpush1.msra.mxu0 0.0
    %282 = vmatprep.subr.mxu0 0.0
    %283 = vmatpush1.msra.mxu0 0.0
    %284 = vmatprep.subr.mxu0 0.0
    %285 = vmatpush1.msra.mxu0 0.0
    %286 = vmatprep.subr.mxu0 0.0
    %287 = vmatpush1.msra.mxu0 0.0
    %288 = vmatprep.subr.mxu0 0.0
    %289 = vmatpush1.msra.mxu0 0.0
    %290 = vmatprep.subr.mxu0 0.0
    %291 = vmatpush1.msra.mxu0 0.0
    %292 = vmatprep.subr.mxu0 0.0
    %293 = vmatpush1.msra.mxu0 0.0
    %294 = vmatprep.subr.mxu0 0.0
    %295 = vmatpush1.msra.mxu0 0.0
    %296 = vmatprep.subr.mxu0 0.0
    %297 = vmatpush1.msra.mxu0 0.0
    %298 = vmatprep.subr.mxu0 0.0
    %299 = vmatpush1.msra.mxu0 0.0
    %300 = vmatprep.subr.mxu0 0.0
    %301 = vmatpush1.msra.mxu0 0.0
    %302 = vmatprep.subr.mxu0 0.0
    %303 = vmatpush1.msra.mxu0 0.0
    %304 = vmatprep.subr.mxu0 0.0
    %305 = vmatpush1.msra.mxu0 0.0
    %306 = vmatprep.subr.mxu0 0.0
    %307 = vmatpush1.msra.mxu0 0.0
    %308 = vmatprep.subr.mxu0 0.0
    %309 = vmatpush1.msra.mxu0 0.0
    %310 = vmatprep.subr.mxu0 0.0
    %311 = vmatpush1.msra.mxu0 0.0
    %312 = vmatprep.subr.mxu0 0.0
    %313 = vmatpush1.msra.mxu0 0.0
    %314 = vmatprep.subr.mxu0 0.0
    %315 = vmatpush1.msra.mxu0 0.0
    %316 = vmatprep.subr.mxu0 0.0
    %317 = vmatpush1.msra.mxu0 0.0
    %318 = vmatprep.subr.mxu0 0.0
    %319 = vmatpush1.msra.mxu0 0.0
    %320 = vmatprep.subr.mxu0 0.0
    %321 = vmatpush1.msra.mxu0 0.0
    %322 = vmatprep.subr.mxu0 0.0
    %323 = vmatpush1.msra.mxu0 0.0
    %324 = vmatprep.subr.mxu0 0.0
    %325 = vmatpush1.msra.mxu0 0.0
    %326 = vmatprep.mubr.f32.mxu0 0.0
    %327 = vmatmul.mubr.f32.gmra.mrb[0].mxu0 %v257
    %v328 = vpop.f32.mrb[0].mxu0
    %v329 = vadd.f32 0.0, %v328
    %v330 = vpop.f32.mrb[0].mxu0
    %331 = vmatprep.mubr.f32.mxu0 0.0
    %332 = vmatmul.mubr.f32.gmra.mrb[0].mxu0 %v260
    %v333 = vpop.f32.mrb[0].mxu0
    %v334 = vadd.f32 0.0, %v333
    %v335 = vpop.f32.mrb[0].mxu0
    %336 = vdwg.mxu0
    %v339 = vunpack.c.l.s4 1966171168
    %v340 = vunpack.c.0.s8 %v339
    %v341 = vlaneseq
    %v342 = vshrl.u32 %v341, 7
    %v343 = vsub.s32 %v340, %v342
    %v344 = vrot.slane %v249, %v343
    %v345 = vcombine.high %v344, %v344
    %v347 = vunpack.c.l.s4 1966171168
    %v348 = vunpack.c.0.s8 %v347
    %v349 = vlaneseq
    %v350 = vshrl.u32 %v349, 7
    %v351 = vsub.s32 %v348, %v350
    %v352 = vrot.slane %v344, %v351
    %v354 = vunpack.c.l.s4 1966171168
    %v355 = vunpack.c.0.s8 %v354
    %v356 = vlaneseq
    %v357 = vshrl.u32 %v356, 7
    %v358 = vsub.s32 %v355, %v357
    %v359 = vrot.slane %v345, %v358
    %v360 = vlaneseq
    %v361 = vshrl.u32 %v360, 7
    %v362 = vsub.s32 0, %v361
    %v363 = vrot.slane %v352, %v362
    %v364 = vlaneseq
    %v365 = vshrl.u32 %v364, 7
    %v366 = vsub.s32 0, %v365
    %v367 = vrot.slane %v359, %v366
    %v370 = vadd.f32 %v329, %v363
    %v371 = vadd.f32 %v334, %v367
    %v372 = vld [vmem:[%s7] sm:$0x1]
    %v374 = vlaneseq
    %v375 = vshrl.u32 %v374, 7
    %v376 = vsub.s32 0, %v375
    %v377 = vrot.slane %v372, %v376
    %v379 = vadd.f32 %v370, %v377
    %v380 = vadd.f32 %v371, %v377
    %v381 = vmax.f32 %v379, 0.0
    %v382 = vmax.f32 %v380, 0.0
    %v383 = vld [vmem:[%s8] sm:$0x1]
    %v385 = vlaneseq
    %v386 = vshrl.u32 %v385, 7
    %v387 = vsub.s32 0, %v386
    %v388 = vrot.slane %v383, %v387
    %v390 = vmul.f32 %v381, %v388
    %v391 = vmul.f32 %v382, %v388
    %v392 = vsel %vm178, %v390, 0.0
    %393 = vadd.xlane.f32.xlu0 %v392
    %v394 = vpop.xlane.xlu0 %393
    %v395 = vsel %vm178, %v391, 0.0
    %396 = vadd.xlane.f32.xlu0 %v395
    %v397 = vpop.xlane.xlu0 %396
    %v400 = vlaneseq
    %v401 = vshrl.u32 %v400, 7
    %v402 = vsub.s32 %v61, %v401
    %v403 = vrot.slane %v394, %v402
    %v404 = vlaneseq
    %v405 = vshrl.u32 %v404, 7
    %v406 = vsub.s32 %v61, %v405
    %v407 = vrot.slane %v397, %v406
    %vm408 = vcmask 1041409
    %v409 = vsel %vm408, %v407, %v403
    %vm411 = vcmask 58368
    %v412 = vsel %vm411, %v409, -inf
    %413 = vmax.xlane.f32.xlu0 %v412
    %v414 = vpop.xlane.xlu0 %413
    %v416 = vlaneseq
    %v417 = vshrl.u32 %v416, 7
    %v418 = vsub.s32 0, %v417
    %v419 = vrot.slane %v414, %v418
    %v420 = vlaneseq
    %v421 = vshrl.u32 %v420, 7
    %v422 = vsub.s32 1, %v421
    %v423 = vrot.slane %v414, %v422
    %v426 = vsub.f32 %v394, %v419
    %v427 = vsub.f32 %v397, %v423
    %v428 = vmul.f32 %v426, 1.442695
    %v429 = vpow.pop %v428
    %v430 = vmul.f32 %v427, 1.442695
    %v431 = vpow.pop %v430
    %434 = vset.pattern.permute.xlu0 0
    %435 = vperm.xlu0 %434, %v429
    %v436 = vpop.permute.xlu0 %435
    %437 = vset.pattern.permute.xlu0 0
    %438 = vperm.xlu0 %437, %v431
    %v439 = vpop.permute.xlu0 %438
    %v440 = vlaneseq
    %v441 = vshrl.u32 %v440, 7
    %v442 = vsub.s32 %v61, %v441
    %v443 = vrot.slane %v436, %v442
    %v444 = vlaneseq
    %v445 = vshrl.u32 %v444, 7
    %v446 = vsub.s32 %v61, %v445
    %v447 = vrot.slane %v439, %v446
    %v448 = vsel %vm408, %v447, %v443
    %v450 = vsel %vm411, %v448, 0.0
    %451 = vadd.xlane.f32.xlu0 %v450
    %v452 = vpop.xlane.xlu0 %451
    %v453 = vrcp.pop %v452
    %v454 = vmul.f32 %v452, %v453
    %v455 = vsub.f32 2.0, %v454
    %v456 = vmul.f32 %v453, %v455
    %v458 = vlaneseq
    %v459 = vshrl.u32 %v458, 7
    %v460 = vsub.s32 0, %v459
    %v461 = vrot.slane %v456, %v460
    %v462 = vlaneseq
    %v463 = vshrl.u32 %v462, 7
    %v464 = vsub.s32 1, %v463
    %v465 = vrot.slane %v456, %v464
    %v468 = vmul.f32 %v429, %v461
    %v469 = vmul.f32 %v431, %v465
    %471 = vset.pattern.permute.xlu0 0
    %472 = vperm.xlu0 %471, %v468
    %v473 = vpop.permute.xlu0 %472
    %v474 = vlaneseq
    %v475 = vshrl.u32 %v474, 7
    %v476 = vsub.s32 %v61, %v475
    %v477 = vrot.slane %v473, %v476
    %vm478 = vcmask 64512
    %v479 = vsel %vm478, %v477, 0
    %481 = vmatprep.subr.mxu0 0.0
    %482 = vmatpush1.msra.mxu0 %v57
    %483 = vmatprep.subr.mxu0 0.0
    %484 = vmatpush1.msra.mxu0 0.0
    %485 = vmatprep.subr.mxu0 0.0
    %486 = vmatpush1.msra.mxu0 0.0
    %487 = vmatprep.subr.mxu0 0.0
    %488 = vmatpush1.msra.mxu0 0.0
    %489 = vmatprep.subr.mxu0 0.0
    %490 = vmatpush1.msra.mxu0 0.0
    %491 = vmatprep.subr.mxu0 0.0
    %492 = vmatpush1.msra.mxu0 0.0
    %493 = vmatprep.subr.mxu0 0.0
    %494 = vmatpush1.msra.mxu0 0.0
    %495 = vmatprep.subr.mxu0 0.0
    %496 = vmatpush1.msra.mxu0 0.0
    %497 = vmatprep.subr.mxu0 0.0
    %498 = vmatpush1.msra.mxu0 0.0
    %499 = vmatprep.subr.mxu0 0.0
    %500 = vmatpush1.msra.mxu0 0.0
    %501 = vmatprep.subr.mxu0 0.0
    %502 = vmatpush1.msra.mxu0 0.0
    %503 = vmatprep.subr.mxu0 0.0
    %504 = vmatpush1.msra.mxu0 0.0
    %505 = vmatprep.subr.mxu0 0.0
    %506 = vmatpush1.msra.mxu0 0.0
    %507 = vmatprep.subr.mxu0 0.0
    %508 = vmatpush1.msra.mxu0 0.0
    %509 = vmatprep.subr.mxu0 0.0
    %510 = vmatpush1.msra.mxu0 0.0
    %511 = vmatprep.subr.mxu0 0.0
    %512 = vmatpush1.msra.mxu0 0.0
    %513 = vmatprep.subr.mxu0 0.0
    %514 = vmatpush1.msra.mxu0 0.0
    %515 = vmatprep.subr.mxu0 0.0
    %516 = vmatpush1.msra.mxu0 0.0
    %517 = vmatprep.subr.mxu0 0.0
    %518 = vmatpush1.msra.mxu0 0.0
    %519 = vmatprep.subr.mxu0 0.0
    %520 = vmatpush1.msra.mxu0 0.0
    %521 = vmatprep.subr.mxu0 0.0
    %522 = vmatpush1.msra.mxu0 0.0
    %523 = vmatprep.subr.mxu0 0.0
    %524 = vmatpush1.msra.mxu0 0.0
    %525 = vmatprep.subr.mxu0 0.0
    %526 = vmatpush1.msra.mxu0 0.0
    %527 = vmatprep.subr.mxu0 0.0
    %528 = vmatpush1.msra.mxu0 0.0
    %529 = vmatprep.subr.mxu0 0.0
    %530 = vmatpush1.msra.mxu0 0.0
    %531 = vmatprep.subr.mxu0 0.0
    %532 = vmatpush1.msra.mxu0 0.0
    %533 = vmatprep.subr.mxu0 0.0
    %534 = vmatpush1.msra.mxu0 0.0
    %535 = vmatprep.subr.mxu0 0.0
    %536 = vmatpush1.msra.mxu0 0.0
    %537 = vmatprep.subr.mxu0 0.0
    %538 = vmatpush1.msra.mxu0 0.0
    %539 = vmatprep.subr.mxu0 0.0
    %540 = vmatpush1.msra.mxu0 0.0
    %541 = vmatprep.subr.mxu0 0.0
    %542 = vmatpush1.msra.mxu0 0.0
    %543 = vmatprep.subr.mxu0 0.0
    %544 = vmatpush1.msra.mxu0 0.0
    %545 = vmatprep.mubr.f32.mxu0 0.0
    %546 = vmatmul.mubr.f32.gmra.mrb[0].mxu0 %v479
    %v547 = vpop.f32.mrb[0].mxu0
    %v548 = vadd.f32 0.0, %v547
    %v549 = vpop.f32.mrb[0].mxu0
    %550 = vdwg.mxu0
    %552 = vset.pattern.permute.xlu0 0
    %553 = vperm.xlu0 %552, %v469
    %v554 = vpop.permute.xlu0 %553
    %v555 = vlaneseq
    %v556 = vshrl.u32 %v555, 7
    %v557 = vsub.s32 %v61, %v556
    %v558 = vrot.slane %v554, %v557
    %v559 = vsel %vm478, %v558, 0
    %561 = vmatprep.subr.mxu0 0.0
    %562 = vmatpush1.msra.mxu0 %v58
    %563 = vmatprep.subr.mxu0 0.0
    %564 = vmatpush1.msra.mxu0 0.0
    %565 = vmatprep.subr.mxu0 0.0
    %566 = vmatpush1.msra.mxu0 0.0
    %567 = vmatprep.subr.mxu0 0.0
    %568 = vmatpush1.msra.mxu0 0.0
    %569 = vmatprep.subr.mxu0 0.0
    %570 = vmatpush1.msra.mxu0 0.0
    %571 = vmatprep.subr.mxu0 0.0
    %572 = vmatpush1.msra.mxu0 0.0
    %573 = vmatprep.subr.mxu0 0.0
    %574 = vmatpush1.msra.mxu0 0.0
    %575 = vmatprep.subr.mxu0 0.0
    %576 = vmatpush1.msra.mxu0 0.0
    %577 = vmatprep.subr.mxu0 0.0
    %578 = vmatpush1.msra.mxu0 0.0
    %579 = vmatprep.subr.mxu0 0.0
    %580 = vmatpush1.msra.mxu0 0.0
    %581 = vmatprep.subr.mxu0 0.0
    %582 = vmatpush1.msra.mxu0 0.0
    %583 = vmatprep.subr.mxu0 0.0
    %584 = vmatpush1.msra.mxu0 0.0
    %585 = vmatprep.subr.mxu0 0.0
    %586 = vmatpush1.msra.mxu0 0.0
    %587 = vmatprep.subr.mxu0 0.0
    %588 = vmatpush1.msra.mxu0 0.0
    %589 = vmatprep.subr.mxu0 0.0
    %590 = vmatpush1.msra.mxu0 0.0
    %591 = vmatprep.subr.mxu0 0.0
    %592 = vmatpush1.msra.mxu0 0.0
    %593 = vmatprep.subr.mxu0 0.0
    %594 = vmatpush1.msra.mxu0 0.0
    %595 = vmatprep.subr.mxu0 0.0
    %596 = vmatpush1.msra.mxu0 0.0
    %597 = vmatprep.subr.mxu0 0.0
    %598 = vmatpush1.msra.mxu0 0.0
    %599 = vmatprep.subr.mxu0 0.0
    %600 = vmatpush1.msra.mxu0 0.0
    %601 = vmatprep.subr.mxu0 0.0
    %602 = vmatpush1.msra.mxu0 0.0
    %603 = vmatprep.subr.mxu0 0.0
    %604 = vmatpush1.msra.mxu0 0.0
    %605 = vmatprep.subr.mxu0 0.0
    %606 = vmatpush1.msra.mxu0 0.0
    %607 = vmatprep.subr.mxu0 0.0
    %608 = vmatpush1.msra.mxu0 0.0
    %609 = vmatprep.subr.mxu0 0.0
    %610 = vmatpush1.msra.mxu0 0.0
    %611 = vmatprep.subr.mxu0 0.0
    %612 = vmatpush1.msra.mxu0 0.0
    %613 = vmatprep.subr.mxu0 0.0
    %614 = vmatpush1.msra.mxu0 0.0
    %615 = vmatprep.subr.mxu0 0.0
    %616 = vmatpush1.msra.mxu0 0.0
    %617 = vmatprep.subr.mxu0 0.0
    %618 = vmatpush1.msra.mxu0 0.0
    %619 = vmatprep.subr.mxu0 0.0
    %620 = vmatpush1.msra.mxu0 0.0
    %621 = vmatprep.subr.mxu0 0.0
    %622 = vmatpush1.msra.mxu0 0.0
    %623 = vmatprep.subr.mxu0 0.0
    %624 = vmatpush1.msra.mxu0 0.0
    %625 = vmatprep.mubr.f32.mxu0 0.0
    %626 = vmatmul.mubr.f32.gmra.mrb[0].mxu0 %v559
    %v627 = vpop.f32.mrb[0].mxu0
    %v628 = vadd.f32 0.0, %v627
    %v629 = vpop.f32.mrb[0].mxu0
    %630 = vdwg.mxu0
    %v631 = vld [vmem:[%s9] sm:$0xff]
    %v632 = vld [vmem:[%s9 + $0x8] sm:$0xff]
    %v633 = vld [vmem:[%s9 + $0x10] sm:$0xff]
    %v634 = vld [vmem:[%s9 + $0x18] sm:$0xff]
    %v635 = vld [vmem:[%s10] sm:$0xff]
    %v636 = vld [vmem:[%s10 + $0x8] sm:$0xff]
    %v637 = vld [vmem:[%s10 + $0x10] sm:$0xff]
    %v638 = vld [vmem:[%s10 + $0x18] sm:$0xff]
    %v640 = vsel %vm178, %v171, 0
    %642 = vmatprep.subr.mxu0 0.0
    %643 = vmatpush1.msra.mxu0 %v635
    %644 = vmatprep.subr.mxu0 0.0
    %645 = vmatpush1.msra.mxu0 %v636
    %646 = vmatprep.subr.mxu0 0.0
    %647 = vmatpush1.msra.mxu0 %v637
    %648 = vmatprep.subr.mxu0 0.0
    %649 = vmatpush1.msra.mxu0 %v638
    %650 = vmatprep.subr.mxu0 0.0
    %651 = vmatpush1.msra.mxu0 0.0
    %652 = vmatprep.subr.mxu0 0.0
    %653 = vmatpush1.msra.mxu0 0.0
    %654 = vmatprep.subr.mxu0 0.0
    %655 = vmatpush1.msra.mxu0 0.0
    %656 = vmatprep.subr.mxu0 0.0
    %657 = vmatpush1.msra.mxu0 0.0
    %658 = vmatprep.subr.mxu0 0.0
    %659 = vmatpush1.msra.mxu0 0.0
    %660 = vmatprep.subr.mxu0 0.0
    %661 = vmatpush1.msra.mxu0 0.0
    %662 = vmatprep.subr.mxu0 0.0
    %663 = vmatpush1.msra.mxu0 0.0
    %664 = vmatprep.subr.mxu0 0.0
    %665 = vmatpush1.msra.mxu0 0.0
    %666 = vmatprep.subr.mxu0 0.0
    %667 = vmatpush1.msra.mxu0 0.0
    %668 = vmatprep.subr.mxu0 0.0
    %669 = vmatpush1.msra.mxu0 0.0
    %670 = vmatprep.subr.mxu0 0.0
    %671 = vmatpush1.msra.mxu0 0.0
    %672 = vmatprep.subr.mxu0 0.0
    %673 = vmatpush1.msra.mxu0 0.0
    %674 = vmatprep.subr.mxu0 0.0
    %675 = vmatpush1.msra.mxu0 0.0
    %676 = vmatprep.subr.mxu0 0.0
    %677 = vmatpush1.msra.mxu0 0.0
    %678 = vmatprep.subr.mxu0 0.0
    %679 = vmatpush1.msra.mxu0 0.0
    %680 = vmatprep.subr.mxu0 0.0
    %681 = vmatpush1.msra.mxu0 0.0
    %682 = vmatprep.subr.mxu0 0.0
    %683 = vmatpush1.msra.mxu0 0.0
    %684 = vmatprep.subr.mxu0 0.0
    %685 = vmatpush1.msra.mxu0 0.0
    %686 = vmatprep.subr.mxu0 0.0
    %687 = vmatpush1.msra.mxu0 0.0
    %688 = vmatprep.subr.mxu0 0.0
    %689 = vmatpush1.msra.mxu0 0.0
    %690 = vmatprep.subr.mxu0 0.0
    %691 = vmatpush1.msra.mxu0 0.0
    %692 = vmatprep.subr.mxu0 0.0
    %693 = vmatpush1.msra.mxu0 0.0
    %694 = vmatprep.subr.mxu0 0.0
    %695 = vmatpush1.msra.mxu0 0.0
    %696 = vmatprep.subr.mxu0 0.0
    %697 = vmatpush1.msra.mxu0 0.0
    %698 = vmatprep.subr.mxu0 0.0
    %699 = vmatpush1.msra.mxu0 0.0
    %700 = vmatprep.subr.mxu0 0.0
    %701 = vmatpush1.msra.mxu0 0.0
    %702 = vmatprep.subr.mxu0 0.0
    %703 = vmatpush1.msra.mxu0 0.0
    %704 = vmatprep.subr.mxu0 0.0
    %705 = vmatpush1.msra.mxu0 0.0
    %706 = vmatprep.mubr.f32.mxu0 0.0
    %707 = vmatmul.mubr.f32.gmra.mrb[0].mxu0 %v640
    %v708 = vpop.f32.mrb[0].mxu0
    %v709 = vadd.f32 0.0, %v708
    %v710 = vpop.f32.mrb[0].mxu0
    %711 = vdwg.mxu0
    %v714 = vrot.slane %v628, 7
    %v715 = vsel %vm408, %v714, %v548
    %v716 = vsel %vm178, %v715, 0
    %718 = vmatprep.subr.mxu0 0.0
    %719 = vmatpush1.msra.mxu0 %v631
    %720 = vmatprep.subr.mxu0 0.0
    %721 = vmatpush1.msra.mxu0 %v632
    %722 = vmatprep.subr.mxu0 0.0
    %723 = vmatpush1.msra.mxu0 %v633
    %724 = vmatprep.subr.mxu0 0.0
    %725 = vmatpush1.msra.mxu0 %v634
    %726 = vmatprep.subr.mxu0 0.0
    %727 = vmatpush1.msra.mxu0 0.0
    %728 = vmatprep.subr.mxu0 0.0
    %729 = vmatpush1.msra.mxu0 0.0
    %730 = vmatprep.subr.mxu0 0.0
    %731 = vmatpush1.msra.mxu0 0.0
    %732 = vmatprep.subr.mxu0 0.0
    %733 = vmatpush1.msra.mxu0 0.0
    %734 = vmatprep.subr.mxu0 0.0
    %735 = vmatpush1.msra.mxu0 0.0
    %736 = vmatprep.subr.mxu0 0.0
    %737 = vmatpush1.msra.mxu0 0.0
    %738 = vmatprep.subr.mxu0 0.0
    %739 = vmatpush1.msra.mxu0 0.0
    %740 = vmatprep.subr.mxu0 0.0
    %741 = vmatpush1.msra.mxu0 0.0
    %742 = vmatprep.subr.mxu0 0.0
    %743 = vmatpush1.msra.mxu0 0.0
    %744 = vmatprep.subr.mxu0 0.0
    %745 = vmatpush1.msra.mxu0 0.0
    %746 = vmatprep.subr.mxu0 0.0
    %747 = vmatpush1.msra.mxu0 0.0
    %748 = vmatprep.subr.mxu0 0.0
    %749 = vmatpush1.msra.mxu0 0.0
    %750 = vmatprep.subr.mxu0 0.0
    %751 = vmatpush1.msra.mxu0 0.0
    %752 = vmatprep.subr.mxu0 0.0
    %753 = vmatpush1.msra.mxu0 0.0
    %754 = vmatprep.subr.mxu0 0.0
    %755 = vmatpush1.msra.mxu0 0.0
    %756 = vmatprep.subr.mxu0 0.0
    %757 = vmatpush1.msra.mxu0 0.0
    %758 = vmatprep.subr.mxu0 0.0
    %759 = vmatpush1.msra.mxu0 0.0
    %760 = vmatprep.subr.mxu0 0.0
    %761 = vmatpush1.msra.mxu0 0.0
    %762 = vmatprep.subr.mxu0 0.0
    %763 = vmatpush1.msra.mxu0 0.0
    %764 = vmatprep.subr.mxu0 0.0
    %765 = vmatpush1.msra.mxu0 0.0
    %766 = vmatprep.subr.mxu0 0.0
    %767 = vmatpush1.msra.mxu0 0.0
    %768 = vmatprep.subr.mxu0 0.0
    %769 = vmatpush1.msra.mxu0 0.0
    %770 = vmatprep.subr.mxu0 0.0
    %771 = vmatpush1.msra.mxu0 0.0
    %772 = vmatprep.subr.mxu0 0.0
    %773 = vmatpush1.msra.mxu0 0.0
    %774 = vmatprep.subr.mxu0 0.0
    %775 = vmatpush1.msra.mxu0 0.0
    %776 = vmatprep.subr.mxu0 0.0
    %777 = vmatpush1.msra.mxu0 0.0
    %778 = vmatprep.subr.mxu0 0.0
    %779 = vmatpush1.msra.mxu0 0.0
    %780 = vmatprep.subr.mxu0 0.0
    %781 = vmatpush1.msra.mxu0 0.0
    %782 = vmatprep.mubr.f32.mxu0 0.0
    %783 = vmatmul.mubr.f32.gmra.mrb[0].mxu0 %v716
    %v784 = vpop.f32.mrb[0].mxu0
    %v785 = vadd.f32 %v709, %v784
    %v786 = vpop.f32.mrb[0].mxu0
    %787 = vdwg.mxu0
    %v788 = vld [vmem:[%s11] sm:$0xff]
    %v789 = vld [vmem:[%s11 + $0x8] sm:$0xff]
    %v790 = vld [vmem:[%s11 + $0x10] sm:$0xff]
    %v791 = vld [vmem:[%s11 + $0x18] sm:$0xff]
    %792 = vmatprep.subr.mxu0 0.0
    %793 = vmatpush1.msra.mxu0 %v788
    %794 = vmatprep.subr.mxu0 0.0
    %795 = vmatpush1.msra.mxu0 %v789
    %796 = vmatprep.subr.mxu0 0.0
    %797 = vmatpush1.msra.mxu0 %v790
    %798 = vmatprep.subr.mxu0 0.0
    %799 = vmatpush1.msra.mxu0 %v791
    %800 = vmatprep.subr.mxu0 0.0
    %801 = vmatpush1.msra.mxu0 0.0
    %802 = vmatprep.subr.mxu0 0.0
    %803 = vmatpush1.msra.mxu0 0.0
    %804 = vmatprep.subr.mxu0 0.0
    %805 = vmatpush1.msra.mxu0 0.0
    %806 = vmatprep.subr.mxu0 0.0
    %807 = vmatpush1.msra.mxu0 0.0
    %808 = vmatprep.subr.mxu0 0.0
    %809 = vmatpush1.msra.mxu0 0.0
    %810 = vmatprep.subr.mxu0 0.0
    %811 = vmatpush1.msra.mxu0 0.0
    %812 = vmatprep.subr.mxu0 0.0
    %813 = vmatpush1.msra.mxu0 0.0
    %814 = vmatprep.subr.mxu0 0.0
    %815 = vmatpush1.msra.mxu0 0.0
    %816 = vmatprep.subr.mxu0 0.0
    %817 = vmatpush1.msra.mxu0 0.0
    %818 = vmatprep.subr.mxu0 0.0
    %819 = vmatpush1.msra.mxu0 0.0
    %820 = vmatprep.subr.mxu0 0.0
    %821 = vmatpush1.msra.mxu0 0.0
    %822 = vmatprep.subr.mxu0 0.0
    %823 = vmatpush1.msra.mxu0 0.0
    %824 = vmatprep.subr.mxu0 0.0
    %825 = vmatpush1.msra.mxu0 0.0
    %826 = vmatprep.subr.mxu0 0.0
    %827 = vmatpush1.msra.mxu0 0.0
    %828 = vmatprep.subr.mxu0 0.0
    %829 = vmatpush1.msra.mxu0 0.0
    %830 = vmatprep.subr.mxu0 0.0
    %831 = vmatpush1.msra.mxu0 0.0
    %832 = vmatprep.subr.mxu0 0.0
    %833 = vmatpush1.msra.mxu0 0.0
    %834 = vmatprep.subr.mxu0 0.0
    %835 = vmatpush1.msra.mxu0 0.0
    %836 = vmatprep.subr.mxu0 0.0
    %837 = vmatpush1.msra.mxu0 0.0
    %838 = vmatprep.subr.mxu0 0.0
    %839 = vmatpush1.msra.mxu0 0.0
    %840 = vmatprep.subr.mxu0 0.0
    %841 = vmatpush1.msra.mxu0 0.0
    %842 = vmatprep.subr.mxu0 0.0
    %843 = vmatpush1.msra.mxu0 0.0
    %844 = vmatprep.subr.mxu0 0.0
    %845 = vmatpush1.msra.mxu0 0.0
    %846 = vmatprep.subr.mxu0 0.0
    %847 = vmatpush1.msra.mxu0 0.0
    %848 = vmatprep.subr.mxu0 0.0
    %849 = vmatpush1.msra.mxu0 0.0
    %850 = vmatprep.subr.mxu0 0.0
    %851 = vmatpush1.msra.mxu0 0.0
    %852 = vmatprep.subr.mxu0 0.0
    %853 = vmatpush1.msra.mxu0 0.0
    %854 = vmatprep.subr.mxu0 0.0
    %855 = vmatpush1.msra.mxu0 0.0
    %856 = vmatprep.mubr.f32.mxu0 0.0
    %857 = vmatmul.mubr.f32.gmra.mrb[0].mxu0 %v180
    %v858 = vpop.f32.mrb[0].mxu0
    %v859 = vadd.f32 0.0, %v858
    %v860 = vpop.f32.mrb[0].mxu0
    %861 = vdwg.mxu0
    %v862 = vadd.f32 %v785, %v859
    %v863 = vld [vmem:[%s12] sm:$0x1]
    %v865 = vlaneseq
    %v866 = vshrl.u32 %v865, 7
    %v867 = vsub.s32 0, %v866
    %v868 = vrot.slane %v863, %v867
    %v870 = vadd.f32 %v862, %v868
    %v871 = vsub.f32 0.0, %v870
    %v872 = vmul.f32 %v871, 1.442695
    %v873 = vpow.pop %v872
    %v874 = vadd.f32 %v873, 1.0
    %v875 = vrcp.pop %v874
    %v876 = vmul.f32 1.0, %v875
    %v877 = vtanh.pop %v870
    %879 = vrot.lane.b32.xlu0 %v56, 32
    %v880 = vpop.permute.xlu0 %879
    %v882 = vmul.f32 %v876, %v880
    %884 = vrot.lane.b32.xlu0 %v877, 64
    %v885 = vpop.permute.xlu0 %884
    %v887 = vmul.f32 %v876, %v885
    %889 = vrot.lane.b32.xlu0 %v887, 32
    %v890 = vpop.permute.xlu0 %889
    %v892 = vadd.f32 %v882, %v890
    %v893 = vtanh.pop %v892
    %895 = vrot.lane.b32.xlu0 %v893, 64
    %v896 = vpop.permute.xlu0 %895
    %v898 = vmul.f32 %v876, %v896
    %v899 = vld [vmem:[%s13] sm:$0xff]
    %v900 = vld [vmem:[%s13 + $0x8] sm:$0xff]
    %v901 = vld [vmem:[%s13 + $0x10] sm:$0xff]
    %v902 = vld [vmem:[%s13 + $0x18] sm:$0xff]
    %v903 = vld [vmem:[%s13 + $0x20] sm:$0xff]
    %v904 = vld [vmem:[%s13 + $0x28] sm:$0xff]
    %v905 = vld [vmem:[%s13 + $0x30] sm:$0xff]
    %v906 = vld [vmem:[%s13 + $0x38] sm:$0xff]
    %v907 = vld [vmem:[%s14] sm:$0x3]
    %v909 = vlaneseq
    %v910 = vshrl.u32 %v909, 7
    %v911 = vsub.s32 0, %v910
    %v912 = vrot.slane %v907, %v911
    %v913 = vlaneseq
    %v914 = vshrl.u32 %v913, 7
    %v915 = vsub.s32 1, %v914
    %v916 = vrot.slane %v907, %v915
    %920 = vrot.lane.b32.xlu0 %v898, 32
    %v921 = vpop.permute.xlu0 %920
    %v922 = vsel %vm178, %v921, 0
    %924 = vmatprep.subr.mxu0 %v900
    %925 = vmatpush1.msra.mxu0 %v899
    %926 = vmatprep.subr.mxu0 %v902
    %927 = vmatpush1.msra.mxu0 %v901
    %928 = vmatprep.subr.mxu0 %v904
    %929 = vmatpush1.msra.mxu0 %v903
    %930 = vmatprep.subr.mxu0 %v906
    %931 = vmatpush1.msra.mxu0 %v905
    %932 = vmatprep.subr.mxu0 0.0
    %933 = vmatpush1.msra.mxu0 0.0
    %934 = vmatprep.subr.mxu0 0.0
    %935 = vmatpush1.msra.mxu0 0.0
    %936 = vmatprep.subr.mxu0 0.0
    %937 = vmatpush1.msra.mxu0 0.0
    %938 = vmatprep.subr.mxu0 0.0
    %939 = vmatpush1.msra.mxu0 0.0
    %940 = vmatprep.subr.mxu0 0.0
    %941 = vmatpush1.msra.mxu0 0.0
    %942 = vmatprep.subr.mxu0 0.0
    %943 = vmatpush1.msra.mxu0 0.0
    %944 = vmatprep.subr.mxu0 0.0
    %945 = vmatpush1.msra.mxu0 0.0
    %946 = vmatprep.subr.mxu0 0.0
    %947 = vmatpush1.msra.mxu0 0.0
    %948 = vmatprep.subr.mxu0 0.0
    %949 = vmatpush1.msra.mxu0 0.0
    %950 = vmatprep.subr.mxu0 0.0
    %951 = vmatpush1.msra.mxu0 0.0
    %952 = vmatprep.subr.mxu0 0.0
    %953 = vmatpush1.msra.mxu0 0.0
    %954 = vmatprep.subr.mxu0 0.0
    %955 = vmatpush1.msra.mxu0 0.0
    %956 = vmatprep.subr.mxu0 0.0
    %957 = vmatpush1.msra.mxu0 0.0
    %958 = vmatprep.subr.mxu0 0.0
    %959 = vmatpush1.msra.mxu0 0.0
    %960 = vmatprep.subr.mxu0 0.0
    %961 = vmatpush1.msra.mxu0 0.0
    %962 = vmatprep.subr.mxu0 0.0
    %963 = vmatpush1.msra.mxu0 0.0
    %964 = vmatprep.subr.mxu0 0.0
    %965 = vmatpush1.msra.mxu0 0.0
    %966 = vmatprep.subr.mxu0 0.0
    %967 = vmatpush1.msra.mxu0 0.0
    %968 = vmatprep.subr.mxu0 0.0
    %969 = vmatpush1.msra.mxu0 0.0
    %970 = vmatprep.subr.mxu0 0.0
    %971 = vmatpush1.msra.mxu0 0.0
    %972 = vmatprep.subr.mxu0 0.0
    %973 = vmatpush1.msra.mxu0 0.0
    %974 = vmatprep.subr.mxu0 0.0
    %975 = vmatpush1.msra.mxu0 0.0
    %976 = vmatprep.subr.mxu0 0.0
    %977 = vmatpush1.msra.mxu0 0.0
    %978 = vmatprep.subr.mxu0 0.0
    %979 = vmatpush1.msra.mxu0 0.0
    %980 = vmatprep.subr.mxu0 0.0
    %981 = vmatpush1.msra.mxu0 0.0
    %982 = vmatprep.subr.mxu0 0.0
    %983 = vmatpush1.msra.mxu0 0.0
    %984 = vmatprep.subr.mxu0 0.0
    %985 = vmatpush1.msra.mxu0 0.0
    %986 = vmatprep.subr.mxu0 0.0
    %987 = vmatpush1.msra.mxu0 0.0
    %988 = vmatprep.mubr.f32.mxu0 0.0
    %989 = vmatmul.mubr.f32.gmra.mrb[0].mxu0 %v922
    %v990 = vpop.f32.mrb[0].mxu0
    %v991 = vadd.f32 %v912, %v990
    %v992 = vpop.f32.mrb[0].mxu0
    %v993 = vadd.f32 %v916, %v992
    %994 = vdwg.mxu0
    %v997 = vcombine.low %v991, %v993
    %v999 = vunpack.c.l.s4 1983009808
    %v1000 = vunpack.c.0.s8 %v999
    %v1001 = vlaneseq
    %v1002 = vshrl.u32 %v1001, 7
    %v1003 = vsub.s32 %v1000, %v1002
    %v1004 = vrot.slane %v997, %v1003
    %1006 = vst [vmem:[#allocation2] sm:$0xf] %v1004
    %vm1008 = vcmask 254976
    %1009 = vst.msk [vmem:[#allocation4] sm:$0x3] %vm1008, %v921
    %1011 = vrot.lane.b32.xlu0 %v892, 96
    %v1012 = vpop.permute.xlu0 %1011
    %1014 = vst.msk [vmem:[#allocation6] sm:$0x3] %vm1008, %v1012
    // Predicated region
    $region62: #{tpu_custom_call.1} parent=1 // pred_check
      _
    $region63: #{tpu_custom_call.1} parent=1 // pred_check_branch
      %1016 = sbr.rel (0) target = $region65
    $region64: #{tpu_custom_call.1} parent=1 // pred_region
      %s1018 = ssub.s32 64, 64
      %1019 = vsyncadd [#allocation3], %s1018
      %s1021 = sshll.u32 [#allocation2], 4
      %s1022 = int_to_ptr.vmem [resolvable:$true] %s1021
      %1024 = dma.vmem_to_hbm [thread:$0]  %s1022, 64, %s15, [#allocation3]
    $region65: #{tpu_custom_call.1} parent=1 // pred_fallthru
      _
    // Predicated region
    $region66: #{tpu_custom_call.1} parent=1 // pred_check
      _
    $region67: #{tpu_custom_call.1} parent=1 // pred_check_branch
      %1026 = sbr.rel (0) target = $region69
    $region68: #{tpu_custom_call.1} parent=1 // pred_region
      %s1028 = ssub.s32 32, 32
      %1029 = vsyncadd [#allocation5], %s1028
      %s1031 = sshll.u32 [#allocation4], 4
      %s1032 = int_to_ptr.vmem [resolvable:$true] %s1031
      %1034 = dma.vmem_to_hbm [thread:$0]  %s1032, 32, %s16, [#allocation5]
    $region69: #{tpu_custom_call.1} parent=1 // pred_fallthru
      _
    // Predicated region
    $region70: #{tpu_custom_call.1} parent=1 // pred_check
      _
    $region71: #{tpu_custom_call.1} parent=1 // pred_check_branch
      %1036 = sbr.rel (0) target = $region73
    $region72: #{tpu_custom_call.1} parent=1 // pred_region
      %s1038 = ssub.s32 32, 32
      %1039 = vsyncadd [#allocation5], %s1038
      %s1041 = sshll.u32 [#allocation6], 4
      %s1042 = int_to_ptr.vmem [resolvable:$true] %s1041
      %1044 = dma.vmem_to_hbm [thread:$0]  %s1042, 32, %s17, [#allocation5]
    $region73: #{tpu_custom_call.1} parent=1 // pred_fallthru
      _
    // Predicated region
    $region74: #{tpu_custom_call.1} parent=1 // pred_check
      _
    $region75: #{tpu_custom_call.1} parent=1 // pred_check_branch
      %1046 = sbr.rel (0) target = $region77
    $region76: #{tpu_custom_call.1} parent=1 // pred_region
      %1047 = dma.done [#allocation3], 64
    $region77: #{tpu_custom_call.1} parent=1 // pred_fallthru
      _
    // Predicated region
    $region78: #{tpu_custom_call.1} parent=1 // pred_check
      _
    $region79: #{tpu_custom_call.1} parent=1 // pred_check_branch
      %1049 = sbr.rel (0) target = $region81
    $region80: #{tpu_custom_call.1} parent=1 // pred_region
      %1050 = dma.done [#allocation5], 32
    $region81: #{tpu_custom_call.1} parent=1 // pred_fallthru
      _
    // Predicated region
    $region82: #{tpu_custom_call.1} parent=1 // pred_check
      _
    $region83: #{tpu_custom_call.1} parent=1 // pred_check_branch
      %1052 = sbr.rel (0) target = $region85
    $region84: #{tpu_custom_call.1} parent=1 // pred_region
      %1053 = dma.done [#allocation5], 32
    $region85: #{tpu_custom_call.1} parent=1 // pred_fallthru
      _
    %1054 = vsyncpa [#allocation3], 1
    %1055 = vsyncpa [#allocation5], 1

</llo_original>
